<compile_context>
chip_gen: v5e
topology: v5e:2x2
jax: 0.10.0
libtpu: 0.0.40
codegen_flags: <defaults>
</compile_context>

<pallas_src>
import jax
import jax.numpy as jnp
from jax.experimental import pallas as pl
from jax.experimental.pallas import tpu as pltpu

A_DIM = 6
S_DIM = (6, 8)                       # state_dim
ACTION_DIM = 6                       # a_dim
HID = 128
CAT = 6 * HID                        # 768
FEAT = 1 + 1 + 8 + 8 + A_DIM + 1     # 25
TILE_B_MAX = 512                     # v7x-safe batch tile


def _round_up(n, m):
    return ((n + m - 1) // m) * m


def _actor_kernel(f1_ref, f2_ref, wblk_ref, bcat_ref,
                  w6_ref, b6_ref, w7_ref, b7_ref, vs_ref, out_ref):
    """Both branches stacked along the batch axis; out = bit_rate1 - bit_rate2."""
    tb = f1_ref.shape[0]
    # Stack the two branches -> one matmul chain per grid step.
    feat = jnp.concatenate([f1_ref[...], f2_ref[...]], axis=0)          # [2*tb, 25] f32

    # Fused split_0..split_5 (block-diagonal weight); bf16 operands, f32 acc.
    z = jnp.dot(feat.astype(jnp.bfloat16), wblk_ref[...],
                preferred_element_type=jnp.float32) + bcat_ref[...]     # [2*tb, 768]
    # ReLU on splits 0..4 (cols 0:640, lane-aligned: 640 = 5*128); split_5 has no ReLU.
    cat = jnp.concatenate([jnp.maximum(z[:, :5 * HID], 0.0), z[:, 5 * HID:]], axis=1)

    h = jnp.dot(cat.astype(jnp.bfloat16), w6_ref[...],
                preferred_element_type=jnp.float32) + b6_ref[...]
    h = jnp.maximum(h, 0.0)                                             # [2*tb, 128]

    o = jnp.dot(h.astype(jnp.bfloat16), w7_ref[...],
                preferred_element_type=jnp.float32) + b7_ref[...]
    o = jnp.maximum(o, 0.0)                                             # [2*tb, 6]

    # cube -> normalize -> project onto video sizes without a [*,6]@[6,1] MXU drain:
    #   (sq / deno) @ vs_col  ==  sum(sq * vs_row, -1) / deno
    sq = o * o * o
    deno = jnp.sum(sq, axis=1, keepdims=True)                           # [2*tb, 1]
    numer = jnp.sum(sq * vs_ref[...], axis=1, keepdims=True)            # vs_ref: [1, 6]
    # NOTE: deno == 0 (all outputs ReLU-clipped) gives NaN, matching PyTorch semantics.
    br = numer * pl.reciprocal(deno)                                    # exact reciprocal
    out_ref[...] = br[:tb, :] - br[tb:, :]


def _pack(xb):
    # features in the exact order of torch.cat((split_0..split_5), 1)
    return jnp.concatenate(
        [xb[:, 0, -1:],           # linear0 input  [B, 1]
         xb[:, 1, -1:],           # linear1 input  [B, 1]
         xb[:, 2, :],             # linear2 input  [B, 8]
         xb[:, 3, :],             # linear3 input  [B, 8]
         xb[:, 4, :A_DIM],        # linear4 input  [B, 6]
         xb[:, 5, -1:]],          # linear5 input  [B, 1]
        axis=1)                   # -> [B, 25]


def actor_forward(x, params, *, tile_b_max=TILE_B_MAX):
    """x: [B, 2*s_dim0, s_dim1] float32 (or anything reshapeable to that)."""
    x = x.reshape((-1, S_DIM[0] * 2, S_DIM[1])).astype(jnp.float32)
    B = x.shape[0]
    f1 = _pack(x[:, :6, :])
    f2 = _pack(x[:, 6:, :])

    # Sublane-aligned batch tile; pad B up to a multiple of the tile.
    tile_b = min(tile_b_max, _round_up(B, 8))
    Bp = _round_up(B, tile_b)
    if Bp != B:
        pad = ((0, Bp - B), (0, 0))
        f1 = jnp.pad(f1, pad)
        f2 = jnp.pad(f2, pad)

    (wblk, bcat, w6, b6, w7, b7, vs) = params

    feat_spec = pl.BlockSpec((tile_b, FEAT), lambda i: (i, 0))

    def const_spec(shape):
        n = len(shape)
        return pl.BlockSpec(shape, lambda i, _n=n: (0,) * _n)   # resident weights

    out = pl.pallas_call(
        _actor_kernel,
        out_shape=jax.ShapeDtypeStruct((Bp, 1), jnp.float32),
        grid=(Bp // tile_b,),
        in_specs=[feat_spec, feat_spec,
                  const_spec(wblk.shape), const_spec(bcat.shape),
                  const_spec(w6.shape), const_spec(b6.shape),
                  const_spec(w7.shape), const_spec(b7.shape),
                  const_spec(vs.shape)],
        out_specs=pl.BlockSpec((tile_b, 1), lambda i: (i, 0)),
        compiler_params=pltpu.CompilerParams(
            dimension_semantics=("parallel",)),   # v7x: 2 TCs split the batch grid
    )(f1, f2, wblk, bcat, w6, b6, w7, b7, vs)
    return out[:B]


def make_params(key):
    """Deterministic synthetic parameters matching the PyTorch module's shapes.

    Linear weights are stored transposed ([in, out]); matmul operands are kept in
    bf16 (f32 accumulation in the kernel), biases in f32.  Positive init keeps
    post-ReLU activations nonzero so the cube-normalization denominator never
    vanishes.
    """
    keys = jax.random.split(key, 16)

    def lin(kw, kb, n_in, n_out):
        bound = 1.0 / jnp.sqrt(jnp.float32(n_in))
        w = jax.random.uniform(kw, (n_in, n_out), jnp.float32, 0.0, bound)   # W^T
        b = jax.random.uniform(kb, (1, n_out), jnp.float32, 0.0, bound)
        return w, b

    w0, b0 = lin(keys[0], keys[1], 1, HID)
    w1, b1 = lin(keys[2], keys[3], 1, HID)
    w2, b2 = lin(keys[4], keys[5], 8, HID)
    w3, b3 = lin(keys[6], keys[7], 8, HID)
    w4, b4 = lin(keys[8], keys[9], A_DIM, HID)
    w5, b5 = lin(keys[10], keys[11], 1, HID)
    w6, b6 = lin(keys[12], keys[13], CAT, HID)
    w7, b7 = lin(keys[14], keys[15], HID, ACTION_DIM)

    # Block-diagonal fused weight [25, 768] and fused bias [1, 768].
    wblk = jnp.zeros((FEAT, CAT), jnp.float32)
    row = col = 0
    for w in (w0, w1, w2, w3, w4, w5):
        n_in = w.shape[0]
        wblk = wblk.at[row:row + n_in, col:col + HID].set(w)
        row += n_in
        col += HID
    bcat = jnp.concatenate([b0, b1, b2, b3, b4, b5], axis=1)             # [1, 768]

    vs = jnp.array([[10., 20., 40., 80., 160., 320.]], jnp.float32)      # [1, 6] row

    return (wblk.astype(jnp.bfloat16), bcat,
            w6.astype(jnp.bfloat16), b6,
            w7.astype(jnp.bfloat16), b7, vs)


def reference_forward(x, params):
    """Pure-JAX reference mirroring the PyTorch forward (same bf16 dot casts)."""
    (wblk, bcat, w6, b6, w7, b7, vs) = params
    x = x.reshape((-1, S_DIM[0] * 2, S_DIM[1])).astype(jnp.float32)

    def branch(xb):
        f = _pack(xb)
        z = jnp.dot(f.astype(jnp.bfloat16), wblk,
                    preferred_element_type=jnp.float32) + bcat
        cat = jnp.concatenate([jnp.maximum(z[:, :5 * HID], 0.0), z[:, 5 * HID:]], axis=1)
        h = jnp.maximum(jnp.dot(cat.astype(jnp.bfloat16), w6,
                                preferred_element_type=jnp.float32) + b6, 0.0)
        o = jnp.maximum(jnp.dot(h.astype(jnp.bfloat16), w7,
                                preferred_element_type=jnp.float32) + b7, 0.0)
        sq = o ** 3
        dist = sq / jnp.sum(sq, axis=1, keepdims=True)
        return dist @ vs.reshape(-1, 1)      # original distribution @ video_sizes form

    return branch(x[:, :6, :]) - branch(x[:, 6:, :])


if __name__ == "__main__":
    key = jax.random.PRNGKey(0)
    k_params, k_x1, k_x2 = jax.random.split(key, 3)
    params = make_params(k_params)

    # Small-batch check (exercises batch padding: B=4 -> padded to 8, grid=(1,)).
    B = 4
    x = jax.random.uniform(k_x1, (B, S_DIM[0] * 2, S_DIM[1]), jnp.float32, 0.0, 1.0)
    out = jax.block_until_ready(actor_forward(x, params))
    ref = reference_forward(x, params)
    assert out.shape == (B, 1), out.shape
    assert jnp.allclose(out, ref, rtol=1e-2, atol=1e-2), (out, ref)

    # Multi-step grid check (B=600 -> tile 512, padded to 1024, grid=(2,)).
    B2 = 600
    x2 = jax.random.uniform(k_x2, (B2, S_DIM[0] * 2, S_DIM[1]), jnp.float32, 0.0, 1.0)
    out2 = jax.block_until_ready(actor_forward(x2, params))
    ref2 = reference_forward(x2, params)
    assert out2.shape == (B2, 1), out2.shape
    assert jnp.allclose(out2, ref2, rtol=1e-2, atol=1e-2), \
        float(jnp.max(jnp.abs(out2 - ref2)))

    print("KERNEL_OK")
</pallas_src>

<mosaic_0001>
module attributes {stable_mosaic.version = 11 : i64} {
  func.func @_actor_kernel(%arg0: i32, %arg1: memref<8x25xf32, #tpu.memory_space<vmem>>, %arg2: memref<8x25xf32, #tpu.memory_space<vmem>>, %arg3: memref<25x768xbf16, #tpu.memory_space<vmem>>, %arg4: memref<1x768xf32, #tpu.memory_space<vmem>>, %arg5: memref<768x128xbf16, #tpu.memory_space<vmem>>, %arg6: memref<1x128xf32, #tpu.memory_space<vmem>>, %arg7: memref<128x6xbf16, #tpu.memory_space<vmem>>, %arg8: memref<1x6xf32, #tpu.memory_space<vmem>>, %arg9: memref<1x6xf32, #tpu.memory_space<vmem>>, %arg10: memref<8x1xf32, #tpu.memory_space<vmem>>) attributes {dimension_semantics = [#tpu.dimension_semantics<parallel>], iteration_bounds = array<i64: 1>, scalar_prefetch = 0 : i64, scratch_operands = 0 : i64, tpu.core_type = #tpu.core_type<tc>, window_params = [{transform_indices = @transform_0, window_bounds = array<i64: 8, 25>}, {transform_indices = @transform_1, window_bounds = array<i64: 8, 25>}, {pipeline_mode = #tpu.pipeline_mode<synchronous>, transform_indices = @transform_2, window_bounds = array<i64: 25, 768>}, {pipeline_mode = #tpu.pipeline_mode<synchronous>, transform_indices = @transform_3, window_bounds = array<i64: 1, 768>}, {pipeline_mode = #tpu.pipeline_mode<synchronous>, transform_indices = @transform_4, window_bounds = array<i64: 768, 128>}, {pipeline_mode = #tpu.pipeline_mode<synchronous>, transform_indices = @transform_5, window_bounds = array<i64: 1, 128>}, {pipeline_mode = #tpu.pipeline_mode<synchronous>, transform_indices = @transform_6, window_bounds = array<i64: 128, 6>}, {pipeline_mode = #tpu.pipeline_mode<synchronous>, transform_indices = @transform_7, window_bounds = array<i64: 1, 6>}, {pipeline_mode = #tpu.pipeline_mode<synchronous>, transform_indices = @transform_8, window_bounds = array<i64: 1, 6>}, {transform_indices = @transform_9, window_bounds = array<i64: 8, 1>}]} {
    %c0 = arith.constant 0 : index
    %c0_0 = arith.constant 0 : index
    %0 = vector.load %arg1[%c0, %c0_0] : memref<8x25xf32, #tpu.memory_space<vmem>>, vector<8x25xf32>
    %c0_1 = arith.constant 0 : index
    %c0_2 = arith.constant 0 : index
    %1 = vector.load %arg2[%c0_1, %c0_2] : memref<8x25xf32, #tpu.memory_space<vmem>>, vector<8x25xf32>
    %2 = tpu.concatenate %0, %1 in 0 : vector<8x25xf32>, vector<8x25xf32> -> vector<16x25xf32>
    %3 = arith.truncf %2 : vector<16x25xf32> to vector<16x25xbf16>
    %c0_3 = arith.constant 0 : index
    %c0_4 = arith.constant 0 : index
    %4 = vector.load %arg3[%c0_3, %c0_4] : memref<25x768xbf16, #tpu.memory_space<vmem>>, vector<25x768xbf16>
    %cst = arith.constant dense<0.000000e+00> : vector<16x768xf32>
    %5 = tpu.matmul %3, %4, %cst {dimension_numbers = #tpu.dot_dimension_numbers<[1], [0], [0], [1], [0, 0, 1, 1], [], []>} : vector<16x25xbf16>, vector<25x768xbf16>, vector<16x768xf32> -> vector<16x768xf32>
    %c0_5 = arith.constant 0 : index
    %c0_6 = arith.constant 0 : index
    %6 = vector.load %arg4[%c0_5, %c0_6] : memref<1x768xf32, #tpu.memory_space<vmem>>, vector<1x768xf32>
    %7 = vector.broadcast %6 : vector<1x768xf32> to vector<16x768xf32>
    %8 = arith.addf %5, %7 : vector<16x768xf32>
    %9 = vector.extract_strided_slice %8 {offsets = [0, 0], sizes = [16, 640], strides = [1, 1]} : vector<16x768xf32> to vector<16x640xf32>
    %cst_7 = arith.constant 0.000000e+00 : f32
    %10 = vector.broadcast %cst_7 : f32 to vector<16x640xf32>
    %11 = arith.maximumf %9, %10 : vector<16x640xf32>
    %12 = vector.extract_strided_slice %8 {offsets = [0, 640], sizes = [16, 128], strides = [1, 1]} : vector<16x768xf32> to vector<16x128xf32>
    %13 = tpu.concatenate %11, %12 in 1 : vector<16x640xf32>, vector<16x128xf32> -> vector<16x768xf32>
    %14 = arith.truncf %13 : vector<16x768xf32> to vector<16x768xbf16>
    %c0_8 = arith.constant 0 : index
    %c0_9 = arith.constant 0 : index
    %15 = vector.load %arg5[%c0_8, %c0_9] : memref<768x128xbf16, #tpu.memory_space<vmem>>, vector<768x128xbf16>
    %cst_10 = arith.constant dense<0.000000e+00> : vector<16x128xf32>
    %16 = tpu.matmul %14, %15, %cst_10 {dimension_numbers = #tpu.dot_dimension_numbers<[1], [0], [0], [1], [0, 0, 1, 1], [], []>} : vector<16x768xbf16>, vector<768x128xbf16>, vector<16x128xf32> -> vector<16x128xf32>
    %c0_11 = arith.constant 0 : index
    %c0_12 = arith.constant 0 : index
    %17 = vector.load %arg6[%c0_11, %c0_12] : memref<1x128xf32, #tpu.memory_space<vmem>>, vector<1x128xf32>
    %18 = vector.broadcast %17 : vector<1x128xf32> to vector<16x128xf32>
    %19 = arith.addf %16, %18 : vector<16x128xf32>
    %cst_13 = arith.constant 0.000000e+00 : f32
    %20 = vector.broadcast %cst_13 : f32 to vector<16x128xf32>
    %21 = arith.maximumf %19, %20 : vector<16x128xf32>
    %22 = arith.truncf %21 : vector<16x128xf32> to vector<16x128xbf16>
    %c0_14 = arith.constant 0 : index
    %c0_15 = arith.constant 0 : index
    %23 = vector.load %arg7[%c0_14, %c0_15] : memref<128x6xbf16, #tpu.memory_space<vmem>>, vector<128x6xbf16>
    %cst_16 = arith.constant dense<0.000000e+00> : vector<16x6xf32>
    %24 = tpu.matmul %22, %23, %cst_16 {dimension_numbers = #tpu.dot_dimension_numbers<[1], [0], [0], [1], [0, 0, 1, 1], [], []>} : vector<16x128xbf16>, vector<128x6xbf16>, vector<16x6xf32> -> vector<16x6xf32>
    %c0_17 = arith.constant 0 : index
    %c0_18 = arith.constant 0 : index
    %25 = vector.load %arg8[%c0_17, %c0_18] : memref<1x6xf32, #tpu.memory_space<vmem>>, vector<1x6xf32>
    %26 = vector.broadcast %25 : vector<1x6xf32> to vector<16x6xf32>
    %27 = arith.addf %24, %26 : vector<16x6xf32>
    %cst_19 = arith.constant 0.000000e+00 : f32
    %28 = vector.broadcast %cst_19 : f32 to vector<16x6xf32>
    %29 = arith.maximumf %27, %28 : vector<16x6xf32>
    %30 = arith.mulf %29, %29 : vector<16x6xf32>
    %31 = arith.mulf %30, %29 : vector<16x6xf32>
    %cst_20 = arith.constant dense<0.000000e+00> : vector<16xf32>
    %32 = vector.multi_reduction <add>, %31, %cst_20 [1] : vector<16x6xf32> to vector<16xf32>
    %33 = vector.shape_cast %32 : vector<16xf32> to vector<16x1xf32>
    %c0_21 = arith.constant 0 : index
    %c0_22 = arith.constant 0 : index
    %34 = vector.load %arg9[%c0_21, %c0_22] : memref<1x6xf32, #tpu.memory_space<vmem>>, vector<1x6xf32>
    %35 = vector.broadcast %34 : vector<1x6xf32> to vector<16x6xf32>
    %36 = arith.mulf %31, %35 : vector<16x6xf32>
    %cst_23 = arith.constant dense<0.000000e+00> : vector<16xf32>
    %37 = vector.multi_reduction <add>, %36, %cst_23 [1] : vector<16x6xf32> to vector<16xf32>
    %38 = vector.shape_cast %37 : vector<16xf32> to vector<16x1xf32>
    %39 = tpu.reciprocal %33 : vector<16x1xf32> -> vector<16x1xf32>
    %40 = arith.mulf %38, %39 : vector<16x1xf32>
    %41 = vector.extract_strided_slice %40 {offsets = [0, 0], sizes = [8, 1], strides = [1, 1]} : vector<16x1xf32> to vector<8x1xf32>
    %42 = vector.extract_strided_slice %40 {offsets = [8, 0], sizes = [8, 1], strides = [1, 1]} : vector<16x1xf32> to vector<8x1xf32>
    %43 = arith.subf %41, %42 : vector<8x1xf32>
    %c0_24 = arith.constant 0 : index
    %c0_25 = arith.constant 0 : index
    %44 = vector.load %arg10[%c0_24, %c0_25] : memref<8x1xf32, #tpu.memory_space<vmem>>, vector<8x1xf32>
    tpu.vector_store %arg10[%c0_24, %c0_25], %43 {strides = array<i32>} : memref<8x1xf32, #tpu.memory_space<vmem>>, vector<8x1xf32>,
    return
  }
  func.func @transform_0(%arg0: i32) -> (i32, i32) {
    %c0_i32 = arith.constant 0 : i32
    %c0_i32_0 = arith.constant 0 : i32
    return %arg0, %c0_i32 : i32, i32
  }
  func.func @transform_1(%arg0: i32) -> (i32, i32) {
    %c0_i32 = arith.constant 0 : i32
    %c0_i32_0 = arith.constant 0 : i32
    return %arg0, %c0_i32 : i32, i32
  }
  func.func @transform_2(%arg0: i32) -> (i32, i32) {
    %c0_i32 = arith.constant 0 : i32
    %c0_i32_0 = arith.constant 0 : i32
    %c0_i32_1 = arith.constant 0 : i32
    return %c0_i32, %c0_i32_0 : i32, i32
  }
  func.func @transform_3(%arg0: i32) -> (i32, i32) {
    %c0_i32 = arith.constant 0 : i32
    %c0_i32_0 = arith.constant 0 : i32
    %c0_i32_1 = arith.constant 0 : i32
    return %c0_i32, %c0_i32_0 : i32, i32
  }
  func.func @transform_4(%arg0: i32) -> (i32, i32) {
    %c0_i32 = arith.constant 0 : i32
    %c0_i32_0 = arith.constant 0 : i32
    %c0_i32_1 = arith.constant 0 : i32
    return %c0_i32, %c0_i32_0 : i32, i32
  }
  func.func @transform_5(%arg0: i32) -> (i32, i32) {
    %c0_i32 = arith.constant 0 : i32
    %c0_i32_0 = arith.constant 0 : i32
    %c0_i32_1 = arith.constant 0 : i32
    return %c0_i32, %c0_i32_0 : i32, i32
  }
  func.func @transform_6(%arg0: i32) -> (i32, i32) {
    %c0_i32 = arith.constant 0 : i32
    %c0_i32_0 = arith.constant 0 : i32
    %c0_i32_1 = arith.constant 0 : i32
    return %c0_i32, %c0_i32_0 : i32, i32
  }
  func.func @transform_7(%arg0: i32) -> (i32, i32) {
    %c0_i32 = arith.constant 0 : i32
    %c0_i32_0 = arith.constant 0 : i32
    %c0_i32_1 = arith.constant 0 : i32
    return %c0_i32, %c0_i32_0 : i32, i32
  }
  func.func @transform_8(%arg0: i32) -> (i32, i32) {
    %c0_i32 = arith.constant 0 : i32
    %c0_i32_0 = arith.constant 0 : i32
    %c0_i32_1 = arith.constant 0 : i32
    return %c0_i32, %c0_i32_0 : i32, i32
  }
  func.func @transform_9(%arg0: i32) -> (i32, i32) {
    %c0_i32 = arith.constant 0 : i32
    %c0_i32_0 = arith.constant 0 : i32
    return %arg0, %c0_i32 : i32, i32
  }
}

</mosaic_0001>

<llo_original>
// kernel: tpu_custom_call.1
$region0: #{tpu_custom_call.1}
  #allocation0 [shape = 'u32[]', space=smem, size = 0x4, offset = 0x4, fixed_abs, tag = 'smem constant byte address 0x4 - core index']
  #allocation1 [shape = 'u32[72,128]{1,0:T(1,128)}', space=vmem, size = 0x9000, scoped, tag = 'internal scratch']
  %s0 = inlined_call_operand.vmem [shape: f32[8,25], index: 0, kind: input, shape index: {}]
  %s1 = inlined_call_operand.vmem [shape: f32[8,25], index: 1, kind: input, shape index: {}]
  %s2 = inlined_call_operand.hbm [shape: bf16[25,768], index: 2, kind: input, shape index: {}]
  %s3 = inlined_call_operand.vmem [shape: f32[1,768], index: 3, kind: input, shape index: {}]
  %s4 = inlined_call_operand.hbm [shape: bf16[768,128], index: 4, kind: input, shape index: {}]
  %s5 = inlined_call_operand.vmem [shape: f32[1,128], index: 5, kind: input, shape index: {}]
  %s6 = inlined_call_operand.vmem [shape: bf16[128,6], index: 6, kind: input, shape index: {}]
  %s7 = inlined_call_operand.vmem [shape: f32[1,6], index: 7, kind: input, shape index: {}]
  %s8 = inlined_call_operand.vmem [shape: f32[1,6], index: 8, kind: input, shape index: {}]
  %s9 = inlined_call_operand.vmem [shape: f32[8,1], index: 9, kind: output, shape index: {}]
  %s10 = sld [smem:[#allocation0]]
  $region54: #{tpu_custom_call.1} parent=0
    _
  %s12 = ssub.s32 1, %s10
  %s13 = scalar_select 0, %s12, %s10
  $region1: #{tpu_custom_call.1} parent=0
    #allocation2 [shape = 'u8[49152]{0}', space=vmem, size = 0xc000, scoped, tag = 'input window, operand 2, single buffered']
    #allocation3 [shape = 's32[1]{0}', space=sflag, size = 0x4, scoped, tag = 'scoped memory for tpu_custom_call.1']
    #allocation4 [shape = 'u8[196608]{0}', space=vmem, size = 0x30000, scoped, tag = 'input window, operand 4, single buffered']
    #allocation5 [shape = 's32[1]{0}', space=sflag, size = 0x4, scoped, tag = 'scoped memory for tpu_custom_call.1']
    %14 = vsyncpa [#allocation3], 0
    %15 = vsyncpa [#allocation5], 0
    // Predicated region
    $region2: #{tpu_custom_call.1} parent=1 // pred_check
      _
    $region3: #{tpu_custom_call.1} parent=1 // pred_check_branch
      %17 = sbr.rel (0) target = $region5
    $region4: #{tpu_custom_call.1} parent=1 // pred_region
      _
    $region5: #{tpu_custom_call.1} parent=1 // pred_fallthru
      _
    // Predicated region
    $region6: #{tpu_custom_call.1} parent=1 // pred_check
      _
    $region7: #{tpu_custom_call.1} parent=1 // pred_check_branch
      %19 = sbr.rel (0) target = $region9
    $region8: #{tpu_custom_call.1} parent=1 // pred_region
      _
    $region9: #{tpu_custom_call.1} parent=1 // pred_fallthru
      _
    // Predicated region
    $region10: #{tpu_custom_call.1} parent=1 // pred_check
      _
    $region11: #{tpu_custom_call.1} parent=1 // pred_check_branch
      %21 = sbr.rel (0) target = $region13
    $region12: #{tpu_custom_call.1} parent=1 // pred_region
      %23 = vsyncadd [#allocation3], 0
      %s24 = sshll.u32 %s2, 4
      %s25 = int_to_ptr.hbm [resolvable:$true] %s24
      %s26 = sshll.u32 [#allocation2], 4
      %s27 = int_to_ptr.vmem [resolvable:$true] %s26
      %32 = dma.hbm_to_vmem [thread:$0]  %s25, 1536, %s27, [#allocation3], 384, 384, 24
    $region13: #{tpu_custom_call.1} parent=1 // pred_fallthru
      _
    // Predicated region
    $region14: #{tpu_custom_call.1} parent=1 // pred_check
      _
    $region15: #{tpu_custom_call.1} parent=1 // pred_check_branch
      %34 = sbr.rel (0) target = $region17
    $region16: #{tpu_custom_call.1} parent=1 // pred_region
      _
    $region17: #{tpu_custom_call.1} parent=1 // pred_fallthru
      _
    // Predicated region
    $region18: #{tpu_custom_call.1} parent=1 // pred_check
      _
    $region19: #{tpu_custom_call.1} parent=1 // pred_check_branch
      %36 = sbr.rel (0) target = $region21
    $region20: #{tpu_custom_call.1} parent=1 // pred_region
      %38 = vsyncadd [#allocation5], 0
      %s39 = sshll.u32 %s4, 4
      %s40 = int_to_ptr.hbm [resolvable:$true] %s39
      %s41 = sshll.u32 [#allocation4], 4
      %s42 = int_to_ptr.vmem [resolvable:$true] %s41
      %47 = dma.hbm_to_vmem [thread:$0]  %s40, 6144, %s42, [#allocation5], 64, 64, 4
    $region21: #{tpu_custom_call.1} parent=1 // pred_fallthru
      _
    // Predicated region
    $region22: #{tpu_custom_call.1} parent=1 // pred_check
      _
    $region23: #{tpu_custom_call.1} parent=1 // pred_check_branch
      %49 = sbr.rel (0) target = $region25
    $region24: #{tpu_custom_call.1} parent=1 // pred_region
      _
    $region25: #{tpu_custom_call.1} parent=1 // pred_fallthru
      _
    // Predicated region
    $region26: #{tpu_custom_call.1} parent=1 // pred_check
      _
    $region27: #{tpu_custom_call.1} parent=1 // pred_check_branch
      %51 = sbr.rel (0) target = $region29
    $region28: #{tpu_custom_call.1} parent=1 // pred_region
      _
    $region29: #{tpu_custom_call.1} parent=1 // pred_fallthru
      _
    // Predicated region
    $region30: #{tpu_custom_call.1} parent=1 // pred_check
      _
    $region31: #{tpu_custom_call.1} parent=1 // pred_check_branch
      %53 = sbr.rel (0) target = $region33
    $region32: #{tpu_custom_call.1} parent=1 // pred_region
      _
    $region33: #{tpu_custom_call.1} parent=1 // pred_fallthru
      _
    // Predicated region
    $region34: #{tpu_custom_call.1} parent=1 // pred_check
      _
    $region35: #{tpu_custom_call.1} parent=1 // pred_check_branch
      %55 = sbr.rel (0) target = $region37
    $region36: #{tpu_custom_call.1} parent=1 // pred_region
      _
    $region37: #{tpu_custom_call.1} parent=1 // pred_fallthru
      _
    // Predicated region
    $region38: #{tpu_custom_call.1} parent=1 // pred_check
      _
    $region39: #{tpu_custom_call.1} parent=1 // pred_check_branch
      %57 = sbr.rel (0) target = $region41
    $region40: #{tpu_custom_call.1} parent=1 // pred_region
      %59 = dma.done [#allocation3], 1536
    $region41: #{tpu_custom_call.1} parent=1 // pred_fallthru
      _
    // Predicated region
    $region42: #{tpu_custom_call.1} parent=1 // pred_check
      _
    $region43: #{tpu_custom_call.1} parent=1 // pred_check_branch
      %61 = sbr.rel (0) target = $region45
    $region44: #{tpu_custom_call.1} parent=1 // pred_region
      %63 = dma.done [#allocation5], 6144
    $region45: #{tpu_custom_call.1} parent=1 // pred_fallthru
      _
    %v65 = vld [vmem:[%s0] sm:$0xff]
    %v66 = vld [vmem:[%s1] sm:$0xff]
    %v67 = vpack.c.bf16 %v66, %v65
    %v68 = vld [vmem:[#allocation2] sm:$0xff]
    %v69 = vld [vmem:[#allocation2 + $0x8] sm:$0xff]
    %v70 = vld [vmem:[#allocation2 + $0x10] sm:$0xff]
    %v71 = vld [vmem:[#allocation2 + $0x18] sm:$0xff]
    %v72 = vld [vmem:[#allocation2 + $0x20] sm:$0xff]
    %v73 = vld [vmem:[#allocation2 + $0x28] sm:$0xff]
    %v74 = vld [vmem:[#allocation2 + $0x30] sm:$0xff]
    %v75 = vld [vmem:[#allocation2 + $0x38] sm:$0xff]
    %v76 = vld [vmem:[#allocation2 + $0x40] sm:$0xff]
    %v77 = vld [vmem:[#allocation2 + $0x48] sm:$0x11]
    %v78 = vld [vmem:[#allocation2 + $0x50] sm:$0x11]
    %v79 = vld [vmem:[#allocation2 + $0x58] sm:$0x11]
    %v80 = vld [vmem:[%s3] sm:$0x3f]
    %v82 = vperm.slane %v80, 0
    %v83 = vperm.slane %v80, 1
    %v84 = vperm.slane %v80, 2
    %v85 = vperm.slane %v80, 3
    %v86 = vperm.slane %v80, 4
    %v87 = vperm.slane %v80, 5
    %v106 = vunpack.c.l.b16 %v68
    %v107 = vunpack.c.h.b16 %v68
    %v108 = vunpack.c.l.b16 %v69
    %v109 = vunpack.c.h.b16 %v69
    %v110 = vunpack.c.l.b16 %v70
    %v111 = vunpack.c.h.b16 %v70
    %v112 = vunpack.c.l.b16 %v71
    %v113 = vunpack.c.h.b16 %v71
    %v114 = vunpack.c.l.b16 %v72
    %v115 = vunpack.c.h.b16 %v72
    %v116 = vunpack.c.l.b16 %v73
    %v117 = vunpack.c.h.b16 %v73
    %v118 = vunpack.c.l.b16 %v74
    %v119 = vunpack.c.h.b16 %v74
    %v120 = vunpack.c.l.b16 %v75
    %v121 = vunpack.c.h.b16 %v75
    %v122 = vunpack.c.l.b16 %v76
    %v123 = vunpack.c.h.b16 %v76
    %v124 = vunpack.c.l.b16 %v77
    %v125 = vunpack.c.h.b16 %v77
    %v126 = vunpack.c.l.b16 %v78
    %v127 = vunpack.c.h.b16 %v78
    %v128 = vunpack.c.l.b16 %v79
    %v129 = vunpack.c.h.b16 %v79
    %v130 = vpack.c.b16 %v112, %v106
    %v131 = vpack.c.b16 %v113, %v107
    %v132 = vpack.c.b16 %v114, %v108
    %v133 = vpack.c.b16 %v115, %v109
    %v134 = vpack.c.b16 %v116, %v110
    %v135 = vpack.c.b16 %v117, %v111
    %v136 = vpack.c.b16 %v124, %v118
    %v137 = vpack.c.b16 %v125, %v119
    %v138 = vpack.c.b16 %v126, %v120
    %v139 = vpack.c.b16 %v127, %v121
    %v140 = vpack.c.b16 %v128, %v122
    %v141 = vpack.c.b16 %v129, %v123
    %vm148 = vcmask 203776
    %v150 = vsel %vm148, %v67, 0
    %vm152 = vcmask 1043456
    %vm153 = vcmask 1044480
    %v154 = vsel %vm152, 4294967295, 65535
    %v155 = vsel %vm153, %v154, 0
    %v157 = vand.u32 %v136, %v155
    %v160 = vand.u32 %v137, %v155
    %v163 = vand.u32 %v138, %v155
    %v166 = vand.u32 %v139, %v155
    %v169 = vand.u32 %v140, %v155
    %v172 = vand.u32 %v141, %v155
    %174 = vmatpush.bf16.msra.mxu0 0
    %175 = vmatpush.bf16.msra.mxu0 0
    %176 = vmatpush.bf16.msra.mxu0 0
    %177 = vmatpush.bf16.msra.mxu0 0
    %178 = vmatpush.bf16.msra.mxu0 0
    %179 = vmatpush.bf16.msra.mxu0 0
    %180 = vmatpush.bf16.msra.mxu0 %v157
    %181 = vmatpush.bf16.msra.mxu0 %v130
    %182 = vmatmul.bf16.gmra.mxu0 %v150
    %v183 = vpop.f32.mrf.mxu0
    %v184 = vadd.f32 %v82, %v183
    %v185 = vpop.f32.mrf.mxu0
    %v186 = vadd.f32 %v82, %v185
    %187 = vdwg.mxu0
    %188 = vmatpush.bf16.msra.mxu0 0
    %189 = vmatpush.bf16.msra.mxu0 0
    %190 = vmatpush.bf16.msra.mxu0 0
    %191 = vmatpush.bf16.msra.mxu0 0
    %192 = vmatpush.bf16.msra.mxu0 0
    %193 = vmatpush.bf16.msra.mxu0 0
    %194 = vmatpush.bf16.msra.mxu0 %v160
    %195 = vmatpush.bf16.msra.mxu0 %v131
    %196 = vmatmul.bf16.gmra.mxu0 %v150
    %v197 = vpop.f32.mrf.mxu0
    %v198 = vadd.f32 %v83, %v197
    %v199 = vpop.f32.mrf.mxu0
    %v200 = vadd.f32 %v83, %v199
    %201 = vdwg.mxu0
    %202 = vmatpush.bf16.msra.mxu0 0
    %203 = vmatpush.bf16.msra.mxu0 0
    %204 = vmatpush.bf16.msra.mxu0 0
    %205 = vmatpush.bf16.msra.mxu0 0
    %206 = vmatpush.bf16.msra.mxu0 0
    %207 = vmatpush.bf16.msra.mxu0 0
    %208 = vmatpush.bf16.msra.mxu0 %v163
    %209 = vmatpush.bf16.msra.mxu0 %v132
    %210 = vmatmul.bf16.gmra.mxu0 %v150
    %v211 = vpop.f32.mrf.mxu0
    %v212 = vadd.f32 %v84, %v211
    %v213 = vpop.f32.mrf.mxu0
    %v214 = vadd.f32 %v84, %v213
    %215 = vdwg.mxu0
    %216 = vmatpush.bf16.msra.mxu0 0
    %217 = vmatpush.bf16.msra.mxu0 0
    %218 = vmatpush.bf16.msra.mxu0 0
    %219 = vmatpush.bf16.msra.mxu0 0
    %220 = vmatpush.bf16.msra.mxu0 0
    %221 = vmatpush.bf16.msra.mxu0 0
    %222 = vmatpush.bf16.msra.mxu0 %v166
    %223 = vmatpush.bf16.msra.mxu0 %v133
    %224 = vmatmul.bf16.gmra.mxu0 %v150
    %v225 = vpop.f32.mrf.mxu0
    %v226 = vadd.f32 %v85, %v225
    %v227 = vpop.f32.mrf.mxu0
    %v228 = vadd.f32 %v85, %v227
    %229 = vdwg.mxu0
    %230 = vmatpush.bf16.msra.mxu0 0
    %231 = vmatpush.bf16.msra.mxu0 0
    %232 = vmatpush.bf16.msra.mxu0 0
    %233 = vmatpush.bf16.msra.mxu0 0
    %234 = vmatpush.bf16.msra.mxu0 0
    %235 = vmatpush.bf16.msra.mxu0 0
    %236 = vmatpush.bf16.msra.mxu0 %v169
    %237 = vmatpush.bf16.msra.mxu0 %v134
    %238 = vmatmul.bf16.gmra.mxu0 %v150
    %v239 = vpop.f32.mrf.mxu0
    %v240 = vadd.f32 %v86, %v239
    %v241 = vpop.f32.mrf.mxu0
    %v242 = vadd.f32 %v86, %v241
    %243 = vdwg.mxu0
    %244 = vmatpush.bf16.msra.mxu0 0
    %245 = vmatpush.bf16.msra.mxu0 0
    %246 = vmatpush.bf16.msra.mxu0 0
    %247 = vmatpush.bf16.msra.mxu0 0
    %248 = vmatpush.bf16.msra.mxu0 0
    %249 = vmatpush.bf16.msra.mxu0 0
    %250 = vmatpush.bf16.msra.mxu0 %v172
    %251 = vmatpush.bf16.msra.mxu0 %v135
    %252 = vmatmul.bf16.gmra.mxu0 %v150
    %v253 = vpop.f32.mrf.mxu0
    %v254 = vadd.f32 %v87, %v253
    %v255 = vpop.f32.mrf.mxu0
    %v256 = vadd.f32 %v87, %v255
    %257 = vdwg.mxu0
    %v258 = vmax.f32 %v184, 0.0
    %v259 = vmax.f32 %v198, 0.0
    %v260 = vmax.f32 %v212, 0.0
    %v261 = vmax.f32 %v226, 0.0
    %v262 = vmax.f32 %v240, 0.0
    %v263 = vmax.f32 %v186, 0.0
    %v264 = vmax.f32 %v200, 0.0
    %v265 = vmax.f32 %v214, 0.0
    %v266 = vmax.f32 %v228, 0.0
    %v267 = vmax.f32 %v242, 0.0
    %v268 = vpack.c.bf16 %v263, %v258
    %v269 = vpack.c.bf16 %v264, %v259
    %v270 = vpack.c.bf16 %v265, %v260
    %v271 = vpack.c.bf16 %v266, %v261
    %v272 = vpack.c.bf16 %v267, %v262
    %v273 = vpack.c.bf16 %v256, %v254
    %v274 = vld [vmem:[#allocation4] sm:$0xf]
    %v275 = vld [vmem:[#allocation4 + $0x4] sm:$0xf]
    %v276 = vld [vmem:[#allocation4 + $0x8] sm:$0xf]
    %v277 = vld [vmem:[#allocation4 + $0xc] sm:$0xf]
    %v278 = vld [vmem:[#allocation4 + $0x10] sm:$0xf]
    %v279 = vld [vmem:[#allocation4 + $0x14] sm:$0xf]
    %v280 = vld [vmem:[#allocation4 + $0x18] sm:$0xf]
    %v281 = vld [vmem:[#allocation4 + $0x1c] sm:$0xf]
    %v282 = vld [vmem:[#allocation4 + $0x20] sm:$0xf]
    %v283 = vld [vmem:[#allocation4 + $0x24] sm:$0xf]
    %v284 = vld [vmem:[#allocation4 + $0x28] sm:$0xf]
    %v285 = vld [vmem:[#allocation4 + $0x2c] sm:$0xf]
    %v286 = vld [vmem:[#allocation4 + $0x30] sm:$0xf]
    %v287 = vld [vmem:[#allocation4 + $0x34] sm:$0xf]
    %v288 = vld [vmem:[#allocation4 + $0x38] sm:$0xf]
    %v289 = vld [vmem:[#allocation4 + $0x3c] sm:$0xf]
    %v290 = vld [vmem:[#allocation4 + $0x40] sm:$0xf]
    %v291 = vld [vmem:[#allocation4 + $0x44] sm:$0xf]
    %v292 = vld [vmem:[#allocation4 + $0x48] sm:$0xf]
    %v293 = vld [vmem:[#allocation4 + $0x4c] sm:$0xf]
    %v294 = vld [vmem:[#allocation4 + $0x50] sm:$0xf]
    %v295 = vld [vmem:[#allocation4 + $0x54] sm:$0xf]
    %v296 = vld [vmem:[#allocation4 + $0x58] sm:$0xf]
    %v297 = vld [vmem:[#allocation4 + $0x5c] sm:$0xf]
    %v298 = vld [vmem:[#allocation4 + $0x60] sm:$0xf]
    %v299 = vld [vmem:[#allocation4 + $0x64] sm:$0xf]
    %v300 = vld [vmem:[#allocation4 + $0x68] sm:$0xf]
    %v301 = vld [vmem:[#allocation4 + $0x6c] sm:$0xf]
    %v302 = vld [vmem:[#allocation4 + $0x70] sm:$0xf]
    %v303 = vld [vmem:[#allocation4 + $0x74] sm:$0xf]
    %v304 = vld [vmem:[#allocation4 + $0x78] sm:$0xf]
    %v305 = vld [vmem:[#allocation4 + $0x7c] sm:$0xf]
    %v306 = vld [vmem:[#allocation4 + $0x80] sm:$0xf]
    %v307 = vld [vmem:[#allocation4 + $0x84] sm:$0xf]
    %v308 = vld [vmem:[#allocation4 + $0x88] sm:$0xf]
    %v309 = vld [vmem:[#allocation4 + $0x8c] sm:$0xf]
    %v310 = vld [vmem:[#allocation4 + $0x90] sm:$0xf]
    %v311 = vld [vmem:[#allocation4 + $0x94] sm:$0xf]
    %v312 = vld [vmem:[#allocation4 + $0x98] sm:$0xf]
    %v313 = vld [vmem:[#allocation4 + $0x9c] sm:$0xf]
    %v314 = vld [vmem:[#allocation4 + $0xa0] sm:$0xf]
    %v315 = vld [vmem:[#allocation4 + $0xa4] sm:$0xf]
    %v316 = vld [vmem:[#allocation4 + $0xa8] sm:$0xf]
    %v317 = vld [vmem:[#allocation4 + $0xac] sm:$0xf]
    %v318 = vld [vmem:[#allocation4 + $0xb0] sm:$0xf]
    %v319 = vld [vmem:[#allocation4 + $0xb4] sm:$0xf]
    %v320 = vld [vmem:[#allocation4 + $0xb8] sm:$0xf]
    %v321 = vld [vmem:[#allocation4 + $0xbc] sm:$0xf]
    %v322 = vld [vmem:[#allocation4 + $0xc0] sm:$0xf]
    %v323 = vld [vmem:[#allocation4 + $0xc4] sm:$0xf]
    %v324 = vld [vmem:[#allocation4 + $0xc8] sm:$0xf]
    %v325 = vld [vmem:[#allocation4 + $0xcc] sm:$0xf]
    %v326 = vld [vmem:[#allocation4 + $0xd0] sm:$0xf]
    %v327 = vld [vmem:[#allocation4 + $0xd4] sm:$0xf]
    %v328 = vld [vmem:[#allocation4 + $0xd8] sm:$0xf]
    %v329 = vld [vmem:[#allocation4 + $0xdc] sm:$0xf]
    %v330 = vld [vmem:[#allocation4 + $0xe0] sm:$0xf]
    %v331 = vld [vmem:[#allocation4 + $0xe4] sm:$0xf]
    %v332 = vld [vmem:[#allocation4 + $0xe8] sm:$0xf]
    %v333 = vld [vmem:[#allocation4 + $0xec] sm:$0xf]
    %v334 = vld [vmem:[#allocation4 + $0xf0] sm:$0xf]
    %v335 = vld [vmem:[#allocation4 + $0xf4] sm:$0xf]
    %v336 = vld [vmem:[#allocation4 + $0xf8] sm:$0xf]
    %v337 = vld [vmem:[#allocation4 + $0xfc] sm:$0xf]
    %v338 = vld [vmem:[#allocation4 + $0x100] sm:$0xf]
    %v339 = vld [vmem:[#allocation4 + $0x104] sm:$0xf]
    %v340 = vld [vmem:[#allocation4 + $0x108] sm:$0xf]
    %v341 = vld [vmem:[#allocation4 + $0x10c] sm:$0xf]
    %v342 = vld [vmem:[#allocation4 + $0x110] sm:$0xf]
    %v343 = vld [vmem:[#allocation4 + $0x114] sm:$0xf]
    %v344 = vld [vmem:[#allocation4 + $0x118] sm:$0xf]
    %v345 = vld [vmem:[#allocation4 + $0x11c] sm:$0xf]
    %v346 = vld [vmem:[#allocation4 + $0x120] sm:$0xf]
    %v347 = vld [vmem:[#allocation4 + $0x124] sm:$0xf]
    %v348 = vld [vmem:[#allocation4 + $0x128] sm:$0xf]
    %v349 = vld [vmem:[#allocation4 + $0x12c] sm:$0xf]
    %v350 = vld [vmem:[#allocation4 + $0x130] sm:$0xf]
    %v351 = vld [vmem:[#allocation4 + $0x134] sm:$0xf]
    %v352 = vld [vmem:[#allocation4 + $0x138] sm:$0xf]
    %v353 = vld [vmem:[#allocation4 + $0x13c] sm:$0xf]
    %v354 = vld [vmem:[#allocation4 + $0x140] sm:$0xf]
    %v355 = vld [vmem:[#allocation4 + $0x144] sm:$0xf]
    %v356 = vld [vmem:[#allocation4 + $0x148] sm:$0xf]
    %v357 = vld [vmem:[#allocation4 + $0x14c] sm:$0xf]
    %v358 = vld [vmem:[#allocation4 + $0x150] sm:$0xf]
    %v359 = vld [vmem:[#allocation4 + $0x154] sm:$0xf]
    %v360 = vld [vmem:[#allocation4 + $0x158] sm:$0xf]
    %v361 = vld [vmem:[#allocation4 + $0x15c] sm:$0xf]
    %v362 = vld [vmem:[#allocation4 + $0x160] sm:$0xf]
    %v363 = vld [vmem:[#allocation4 + $0x164] sm:$0xf]
    %v364 = vld [vmem:[#allocation4 + $0x168] sm:$0xf]
    %v365 = vld [vmem:[#allocation4 + $0x16c] sm:$0xf]
    %v366 = vld [vmem:[#allocation4 + $0x170] sm:$0xf]
    %v367 = vld [vmem:[#allocation4 + $0x174] sm:$0xf]
    %v368 = vld [vmem:[#allocation4 + $0x178] sm:$0xf]
    %v369 = vld [vmem:[#allocation4 + $0x17c] sm:$0xf]
    %v370 = vld [vmem:[%s5] sm:$0x1]
    %v372 = vperm.slane %v370, 0
    %v470 = vunpack.c.l.b16 %v274
    %v471 = vunpack.c.l.b16 %v275
    %v472 = vunpack.c.l.b16 %v276
    %v473 = vunpack.c.l.b16 %v277
    %v474 = vunpack.c.l.b16 %v278
    %v475 = vunpack.c.l.b16 %v279
    %v476 = vunpack.c.l.b16 %v280
    %v477 = vunpack.c.l.b16 %v281
    %v478 = vunpack.c.l.b16 %v282
    %v479 = vunpack.c.l.b16 %v283
    %v480 = vunpack.c.l.b16 %v284
    %v481 = vunpack.c.l.b16 %v285
    %v482 = vunpack.c.l.b16 %v286
    %v483 = vunpack.c.l.b16 %v287
    %v484 = vunpack.c.l.b16 %v288
    %v485 = vunpack.c.l.b16 %v289
    %v486 = vunpack.c.l.b16 %v290
    %v487 = vunpack.c.l.b16 %v291
    %v488 = vunpack.c.l.b16 %v292
    %v489 = vunpack.c.l.b16 %v293
    %v490 = vunpack.c.l.b16 %v294
    %v491 = vunpack.c.l.b16 %v295
    %v492 = vunpack.c.l.b16 %v296
    %v493 = vunpack.c.l.b16 %v297
    %v494 = vunpack.c.l.b16 %v298
    %v495 = vunpack.c.l.b16 %v299
    %v496 = vunpack.c.l.b16 %v300
    %v497 = vunpack.c.l.b16 %v301
    %v498 = vunpack.c.l.b16 %v302
    %v499 = vunpack.c.l.b16 %v303
    %v500 = vunpack.c.l.b16 %v304
    %v501 = vunpack.c.l.b16 %v305
    %v502 = vunpack.c.l.b16 %v306
    %v503 = vunpack.c.l.b16 %v307
    %v504 = vunpack.c.l.b16 %v308
    %v505 = vunpack.c.l.b16 %v309
    %v506 = vunpack.c.l.b16 %v310
    %v507 = vunpack.c.l.b16 %v311
    %v508 = vunpack.c.l.b16 %v312
    %v509 = vunpack.c.l.b16 %v313
    %v510 = vunpack.c.l.b16 %v314
    %v511 = vunpack.c.l.b16 %v315
    %v512 = vunpack.c.l.b16 %v316
    %v513 = vunpack.c.l.b16 %v317
    %v514 = vunpack.c.l.b16 %v318
    %v515 = vunpack.c.l.b16 %v319
    %v516 = vunpack.c.l.b16 %v320
    %v517 = vunpack.c.l.b16 %v321
    %v518 = vunpack.c.l.b16 %v322
    %v519 = vunpack.c.l.b16 %v323
    %v520 = vunpack.c.l.b16 %v324
    %v521 = vunpack.c.l.b16 %v325
    %v522 = vunpack.c.l.b16 %v326
    %v523 = vunpack.c.l.b16 %v327
    %v524 = vunpack.c.l.b16 %v328
    %v525 = vunpack.c.l.b16 %v329
    %v526 = vunpack.c.l.b16 %v330
    %v527 = vunpack.c.l.b16 %v331
    %v528 = vunpack.c.l.b16 %v332
    %v529 = vunpack.c.l.b16 %v333
    %v530 = vunpack.c.l.b16 %v334
    %v531 = vunpack.c.l.b16 %v335
    %v532 = vunpack.c.l.b16 %v336
    %v533 = vunpack.c.l.b16 %v337
    %v534 = vunpack.c.l.b16 %v338
    %v535 = vunpack.c.l.b16 %v339
    %v536 = vunpack.c.l.b16 %v340
    %v537 = vunpack.c.l.b16 %v341
    %v538 = vunpack.c.l.b16 %v342
    %v539 = vunpack.c.l.b16 %v343
    %v540 = vunpack.c.l.b16 %v344
    %v541 = vunpack.c.l.b16 %v345
    %v542 = vunpack.c.l.b16 %v346
    %v543 = vunpack.c.l.b16 %v347
    %v544 = vunpack.c.l.b16 %v348
    %v545 = vunpack.c.l.b16 %v349
    %v546 = vunpack.c.l.b16 %v350
    %v547 = vunpack.c.l.b16 %v351
    %v548 = vunpack.c.l.b16 %v352
    %v549 = vunpack.c.l.b16 %v353
    %v550 = vunpack.c.l.b16 %v354
    %v551 = vunpack.c.l.b16 %v355
    %v552 = vunpack.c.l.b16 %v356
    %v553 = vunpack.c.l.b16 %v357
    %v554 = vunpack.c.l.b16 %v358
    %v555 = vunpack.c.l.b16 %v359
    %v556 = vunpack.c.l.b16 %v360
    %v557 = vunpack.c.l.b16 %v361
    %v558 = vunpack.c.l.b16 %v362
    %v559 = vunpack.c.l.b16 %v363
    %v560 = vunpack.c.l.b16 %v364
    %v561 = vunpack.c.l.b16 %v365
    %v562 = vunpack.c.l.b16 %v366
    %v563 = vunpack.c.l.b16 %v367
    %v564 = vunpack.c.l.b16 %v368
    %v565 = vunpack.c.l.b16 %v369
    %v566 = vpack.c.b16 %v471, %v470
    %v567 = vpack.c.b16 %v473, %v472
    %v568 = vpack.c.b16 %v475, %v474
    %v569 = vpack.c.b16 %v477, %v476
    %v570 = vpack.c.b16 %v479, %v478
    %v571 = vpack.c.b16 %v481, %v480
    %v572 = vpack.c.b16 %v483, %v482
    %v573 = vpack.c.b16 %v485, %v484
    %v574 = vpack.c.b16 %v487, %v486
    %v575 = vpack.c.b16 %v489, %v488
    %v576 = vpack.c.b16 %v491, %v490
    %v577 = vpack.c.b16 %v493, %v492
    %v578 = vpack.c.b16 %v495, %v494
    %v579 = vpack.c.b16 %v497, %v496
    %v580 = vpack.c.b16 %v499, %v498
    %v581 = vpack.c.b16 %v501, %v500
    %v582 = vpack.c.b16 %v503, %v502
    %v583 = vpack.c.b16 %v505, %v504
    %v584 = vpack.c.b16 %v507, %v506
    %v585 = vpack.c.b16 %v509, %v508
    %v586 = vpack.c.b16 %v511, %v510
    %v587 = vpack.c.b16 %v513, %v512
    %v588 = vpack.c.b16 %v515, %v514
    %v589 = vpack.c.b16 %v517, %v516
    %v590 = vpack.c.b16 %v519, %v518
    %v591 = vpack.c.b16 %v521, %v520
    %v592 = vpack.c.b16 %v523, %v522
    %v593 = vpack.c.b16 %v525, %v524
    %v594 = vpack.c.b16 %v527, %v526
    %v595 = vpack.c.b16 %v529, %v528
    %v596 = vpack.c.b16 %v531, %v530
    %v597 = vpack.c.b16 %v533, %v532
    %v598 = vpack.c.b16 %v535, %v534
    %v599 = vpack.c.b16 %v537, %v536
    %v600 = vpack.c.b16 %v539, %v538
    %v601 = vpack.c.b16 %v541, %v540
    %v602 = vpack.c.b16 %v543, %v542
    %v603 = vpack.c.b16 %v545, %v544
    %v604 = vpack.c.b16 %v547, %v546
    %v605 = vpack.c.b16 %v549, %v548
    %v606 = vpack.c.b16 %v551, %v550
    %v607 = vpack.c.b16 %v553, %v552
    %v608 = vpack.c.b16 %v555, %v554
    %v609 = vpack.c.b16 %v557, %v556
    %v610 = vpack.c.b16 %v559, %v558
    %v611 = vpack.c.b16 %v561, %v560
    %v612 = vpack.c.b16 %v563, %v562
    %v613 = vpack.c.b16 %v565, %v564
    %662 = vmatpush.bf16.msra.mxu0 %v573
    %663 = vmatpush.bf16.msra.mxu0 %v572
    %664 = vmatpush.bf16.msra.mxu0 %v571
    %665 = vmatpush.bf16.msra.mxu0 %v570
    %666 = vmatpush.bf16.msra.mxu0 %v569
    %667 = vmatpush.bf16.msra.mxu0 %v568
    %668 = vmatpush.bf16.msra.mxu0 %v567
    %669 = vmatpush.bf16.msra.mxu0 %v566
    %670 = vmatmul.bf16.gmra.mxu0 %v268
    %v671 = vpop.f32.mrf.mxu0
    %v672 = vadd.f32 %v372, %v671
    %v673 = vpop.f32.mrf.mxu0
    %v674 = vadd.f32 %v372, %v673
    %675 = vdwg.mxu0
    %676 = vmatpush.bf16.msra.mxu0 %v581
    %677 = vmatpush.bf16.msra.mxu0 %v580
    %678 = vmatpush.bf16.msra.mxu0 %v579
    %679 = vmatpush.bf16.msra.mxu0 %v578
    %680 = vmatpush.bf16.msra.mxu0 %v577
    %681 = vmatpush.bf16.msra.mxu0 %v576
    %682 = vmatpush.bf16.msra.mxu0 %v575
    %683 = vmatpush.bf16.msra.mxu0 %v574
    %684 = vmatmul.bf16.gmra.mxu0 %v269
    %v685 = vpop.f32.mrf.mxu0
    %v686 = vadd.f32 %v672, %v685
    %v687 = vpop.f32.mrf.mxu0
    %v688 = vadd.f32 %v674, %v687
    %689 = vdwg.mxu0
    %690 = vmatpush.bf16.msra.mxu0 %v589
    %691 = vmatpush.bf16.msra.mxu0 %v588
    %692 = vmatpush.bf16.msra.mxu0 %v587
    %693 = vmatpush.bf16.msra.mxu0 %v586
    %694 = vmatpush.bf16.msra.mxu0 %v585
    %695 = vmatpush.bf16.msra.mxu0 %v584
    %696 = vmatpush.bf16.msra.mxu0 %v583
    %697 = vmatpush.bf16.msra.mxu0 %v582
    %698 = vmatmul.bf16.gmra.mxu0 %v270
    %v699 = vpop.f32.mrf.mxu0
    %v700 = vadd.f32 %v686, %v699
    %v701 = vpop.f32.mrf.mxu0
    %v702 = vadd.f32 %v688, %v701
    %703 = vdwg.mxu0
    %704 = vmatpush.bf16.msra.mxu0 %v597
    %705 = vmatpush.bf16.msra.mxu0 %v596
    %706 = vmatpush.bf16.msra.mxu0 %v595
    %707 = vmatpush.bf16.msra.mxu0 %v594
    %708 = vmatpush.bf16.msra.mxu0 %v593
    %709 = vmatpush.bf16.msra.mxu0 %v592
    %710 = vmatpush.bf16.msra.mxu0 %v591
    %711 = vmatpush.bf16.msra.mxu0 %v590
    %712 = vmatmul.bf16.gmra.mxu0 %v271
    %v713 = vpop.f32.mrf.mxu0
    %v714 = vadd.f32 %v700, %v713
    %v715 = vpop.f32.mrf.mxu0
    %v716 = vadd.f32 %v702, %v715
    %717 = vdwg.mxu0
    %718 = vmatpush.bf16.msra.mxu0 %v605
    %719 = vmatpush.bf16.msra.mxu0 %v604
    %720 = vmatpush.bf16.msra.mxu0 %v603
    %721 = vmatpush.bf16.msra.mxu0 %v602
    %722 = vmatpush.bf16.msra.mxu0 %v601
    %723 = vmatpush.bf16.msra.mxu0 %v600
    %724 = vmatpush.bf16.msra.mxu0 %v599
    %725 = vmatpush.bf16.msra.mxu0 %v598
    %726 = vmatmul.bf16.gmra.mxu0 %v272
    %v727 = vpop.f32.mrf.mxu0
    %v728 = vadd.f32 %v714, %v727
    %v729 = vpop.f32.mrf.mxu0
    %v730 = vadd.f32 %v716, %v729
    %731 = vdwg.mxu0
    %732 = vmatpush.bf16.msra.mxu0 %v613
    %733 = vmatpush.bf16.msra.mxu0 %v612
    %734 = vmatpush.bf16.msra.mxu0 %v611
    %735 = vmatpush.bf16.msra.mxu0 %v610
    %736 = vmatpush.bf16.msra.mxu0 %v609
    %737 = vmatpush.bf16.msra.mxu0 %v608
    %738 = vmatpush.bf16.msra.mxu0 %v607
    %739 = vmatpush.bf16.msra.mxu0 %v606
    %740 = vmatmul.bf16.gmra.mxu0 %v273
    %v741 = vpop.f32.mrf.mxu0
    %v742 = vadd.f32 %v728, %v741
    %v743 = vpop.f32.mrf.mxu0
    %v744 = vadd.f32 %v730, %v743
    %745 = vdwg.mxu0
    %v746 = vmax.f32 %v742, 0.0
    %v747 = vmax.f32 %v744, 0.0
    %v748 = vpack.c.bf16 %v747, %v746
    %v749 = vld [vmem:[%s6] sm:$0xf]
    %v750 = vld [vmem:[%s6 + $0x4] sm:$0xf]
    %v751 = vld [vmem:[%s6 + $0x8] sm:$0xf]
    %v752 = vld [vmem:[%s6 + $0xc] sm:$0xf]
    %v753 = vld [vmem:[%s6 + $0x10] sm:$0xf]
    %v754 = vld [vmem:[%s6 + $0x14] sm:$0xf]
    %v755 = vld [vmem:[%s6 + $0x18] sm:$0xf]
    %v756 = vld [vmem:[%s6 + $0x1c] sm:$0xf]
    %v757 = vld [vmem:[%s6 + $0x20] sm:$0xf]
    %v758 = vld [vmem:[%s6 + $0x24] sm:$0xf]
    %v759 = vld [vmem:[%s6 + $0x28] sm:$0xf]
    %v760 = vld [vmem:[%s6 + $0x2c] sm:$0xf]
    %v761 = vld [vmem:[%s6 + $0x30] sm:$0xf]
    %v762 = vld [vmem:[%s6 + $0x34] sm:$0xf]
    %v763 = vld [vmem:[%s6 + $0x38] sm:$0xf]
    %v764 = vld [vmem:[%s6 + $0x3c] sm:$0xf]
    %v765 = vld [vmem:[%s7] sm:$0x1]
    %v767 = vperm.slane %v765, 0
    %v785 = vunpack.c.l.b16 %v749
    %v786 = vunpack.c.l.b16 %v750
    %v787 = vunpack.c.l.b16 %v751
    %v788 = vunpack.c.l.b16 %v752
    %v789 = vunpack.c.l.b16 %v753
    %v790 = vunpack.c.l.b16 %v754
    %v791 = vunpack.c.l.b16 %v755
    %v792 = vunpack.c.l.b16 %v756
    %v793 = vunpack.c.l.b16 %v757
    %v794 = vunpack.c.l.b16 %v758
    %v795 = vunpack.c.l.b16 %v759
    %v796 = vunpack.c.l.b16 %v760
    %v797 = vunpack.c.l.b16 %v761
    %v798 = vunpack.c.l.b16 %v762
    %v799 = vunpack.c.l.b16 %v763
    %v800 = vunpack.c.l.b16 %v764
    %v801 = vpack.c.b16 %v786, %v785
    %v802 = vpack.c.b16 %v788, %v787
    %v803 = vpack.c.b16 %v790, %v789
    %v804 = vpack.c.b16 %v792, %v791
    %v805 = vpack.c.b16 %v794, %v793
    %v806 = vpack.c.b16 %v796, %v795
    %v807 = vpack.c.b16 %v798, %v797
    %v808 = vpack.c.b16 %v800, %v799
    %817 = vmatpush.bf16.msra.mxu0 %v808
    %818 = vmatpush.bf16.msra.mxu0 %v807
    %819 = vmatpush.bf16.msra.mxu0 %v806
    %820 = vmatpush.bf16.msra.mxu0 %v805
    %821 = vmatpush.bf16.msra.mxu0 %v804
    %822 = vmatpush.bf16.msra.mxu0 %v803
    %823 = vmatpush.bf16.msra.mxu0 %v802
    %824 = vmatpush.bf16.msra.mxu0 %v801
    %825 = vmatmul.bf16.gmra.mxu0 %v748
    %v826 = vpop.f32.mrf.mxu0
    %v827 = vadd.f32 %v767, %v826
    %v828 = vpop.f32.mrf.mxu0
    %v829 = vadd.f32 %v767, %v828
    %830 = vdwg.mxu0
    %v831 = vmax.f32 %v827, 0.0
    %v832 = vmax.f32 %v829, 0.0
    %v833 = vmul.f32 %v831, %v831
    %v834 = vmul.f32 %v832, %v832
    %v835 = vmul.f32 %v833, %v831
    %v836 = vmul.f32 %v834, %v832
    %vm837 = vcmask 48128
    %v838 = vsel %vm837, %v835, 0.0
    %839 = vadd.xlane.f32.xlu0 %v838
    %v840 = vpop.xlane.xlu0 %839
    %v841 = vsel %vm837, %v836, 0.0
    %842 = vadd.xlane.f32.xlu0 %v841
    %v843 = vpop.xlane.xlu0 %842
    %v844 = vld [vmem:[%s8] sm:$0x1]
    %v846 = vperm.slane %v844, 0
    %v848 = vmul.f32 %v835, %v846
    %v849 = vmul.f32 %v836, %v846
    %v850 = vsel %vm837, %v848, 0.0
    %851 = vadd.xlane.f32.xlu0 %v850
    %v852 = vpop.xlane.xlu0 %851
    %v853 = vsel %vm837, %v849, 0.0
    %854 = vadd.xlane.f32.xlu0 %v853
    %v855 = vpop.xlane.xlu0 %854
    %v856 = vrcp.pop %v840
    %v857 = vmul.f32 %v840, %v856
    %v858 = vsub.f32 1.0, %v857
    %v859 = vmul.f32 %v856, %v858
    %v860 = vadd.f32 %v856, %v859
    %vm861 = vweird.f32 %v840
    %vm862 = vweird.f32 %v856
    %vm863 = vmor %vm861, %vm862
    %v864 = vsel %vm863, %v856, %v860
    %v865 = vand.u32 2147483647, %v840
    %vm866 = vcmp.eq.f32.partialorder %v865, 8.507059e+37
    %v867 = vand.u32 %v840, 2147483648
    %v868 = vor.u32 1.1754944e-38, %v867
    %v869 = vsel %vm866, %v868, %v864
    %v870 = vrcp.pop %v843
    %v871 = vmul.f32 %v843, %v870
    %v872 = vsub.f32 1.0, %v871
    %v873 = vmul.f32 %v870, %v872
    %v874 = vadd.f32 %v870, %v873
    %vm875 = vweird.f32 %v843
    %vm876 = vweird.f32 %v870
    %vm877 = vmor %vm875, %vm876
    %v878 = vsel %vm877, %v870, %v874
    %v879 = vand.u32 2147483647, %v843
    %vm880 = vcmp.eq.f32.partialorder %v879, 8.507059e+37
    %v881 = vand.u32 %v843, 2147483648
    %v882 = vor.u32 1.1754944e-38, %v881
    %v883 = vsel %vm880, %v882, %v878
    %v884 = vmul.f32 %v852, %v869
    %v885 = vmul.f32 %v855, %v883
    %v886 = vsub.f32 %v884, %v885
    %vm887 = vcmask 7168
    %888 = vst.msk [vmem:[%s9] sm:$0xff] %vm887, %v886
    // Predicated region
    $region46: #{tpu_custom_call.1} parent=1 // pred_check
      _
    $region47: #{tpu_custom_call.1} parent=1 // pred_check_branch
      %890 = sbr.rel (0) target = $region49
    $region48: #{tpu_custom_call.1} parent=1 // pred_region
      _
    $region49: #{tpu_custom_call.1} parent=1 // pred_fallthru
      _
    // Predicated region
    $region50: #{tpu_custom_call.1} parent=1 // pred_check
      _
    $region51: #{tpu_custom_call.1} parent=1 // pred_check_branch
      %892 = sbr.rel (0) target = $region53
    $region52: #{tpu_custom_call.1} parent=1 // pred_region
      _
    $region53: #{tpu_custom_call.1} parent=1 // pred_fallthru
      _
    %893 = vsyncpa [#allocation3], 1
    %894 = vsyncpa [#allocation5], 1

</llo_original>
